<compile_context>
chip_gen: v7x
topology: tpu7x:2x2x1
jax: 0.10.0
libtpu: 0.0.40
codegen_flags: <defaults>
</compile_context>

<pallas_src>
import math

import jax
import jax.numpy as jnp
from jax.experimental import pallas as pl
from jax.experimental.pallas import tpu as pltpu


def _round_up(x, m):
    return ((x + m - 1) // m) * m


def _pick_tile(n_p, pref):
    """Largest multiple of 128 <= pref that divides n_p (n_p is a mult of 128)."""
    t = max(128, (min(pref, n_p) // 128) * 128)
    while n_p % t != 0:
        t -= 128
    return t


# ---------- Pass 1: H = X @ [W_self | W_neigh] --------------------------------
def _proj_kernel(x_ref, w_ref, h_ref):
    h = jnp.dot(x_ref[...], w_ref[...], preferred_element_type=jnp.float32)
    h_ref[...] = h.astype(h_ref.dtype)


# ---------- Pass 2: out = ReLU(H_self + A_norm @ H_neigh + b) -----------------
def _aggr_kernel(adj_ref, hn_ref, hs_ref, b_ref, out_ref, acc_ref):
    k = pl.program_id(1)

    @pl.when(k == 0)
    def _():
        # Fold the bias into the accumulator init (hoisted out of the k loop).
        acc_ref[...] = jnp.broadcast_to(b_ref[...], acc_ref.shape)

    # Neighbor mean aggregation: A_tile @ H_neigh_tile, f32 accumulate on MXU.
    acc_ref[...] += jnp.dot(adj_ref[...], hn_ref[...],
                            preferred_element_type=jnp.float32)

    @pl.when(k == pl.num_programs(1) - 1)
    def _():
        # Self path + ReLU epilogue, all elementwise work in f32.
        h = acc_ref[...] + hs_ref[...].astype(jnp.float32)
        out_ref[...] = jnp.maximum(h, 0.0).astype(out_ref.dtype)


def sage_body_forward(adj_norm, x, w_self, w_neigh, bias, *, tm=256, tk=512):
    n, nfeat = x.shape
    nhid = w_self.shape[1]

    nfeat_p = _round_up(nfeat, 128)
    nhid_p = _round_up(nhid, 128)          # lane-dense output (mult of 128)
    n_p = _round_up(n, 128)
    tm = _pick_tile(n_p, tm)               # row tile
    tk = _pick_tile(n_p, tk)               # reduction tile

    f32, bf16 = jnp.float32, jnp.bfloat16

    # Pad + cast: bf16 MXU operands (halves HBM traffic of the N^2 adjacency),
    # f32 accumulation inside the kernels, f32 bias.
    x_p = jnp.zeros((n_p, nfeat_p), bf16).at[:n, :nfeat].set(x.astype(bf16))
    adj_p = jnp.zeros((n_p, n_p), bf16).at[:n, :n].set(adj_norm.astype(bf16))
    w_cat = jnp.zeros((nfeat_p, 2 * nhid_p), bf16)
    w_cat = w_cat.at[:nfeat, :nhid].set(w_self.astype(bf16))
    w_cat = w_cat.at[:nfeat, nhid_p:nhid_p + nhid].set(w_neigh.astype(bf16))
    b_p = jnp.zeros((1, nhid_p), f32).at[0, :nhid].set(
        bias.reshape(-1).astype(f32))

    cparams = pltpu.CompilerParams(
        dimension_semantics=("parallel",),
        vmem_limit_bytes=32 * 1024 * 1024,
    )

    # ---- Pass 1: one wide projection GEMM ------------------------------------
    h = pl.pallas_call(
        _proj_kernel,
        out_shape=jax.ShapeDtypeStruct((n_p, 2 * nhid_p), bf16),
        grid_spec=pltpu.PrefetchScalarGridSpec(
            num_scalar_prefetch=0,
            grid=(n_p // tm,),
            in_specs=[
                pl.BlockSpec((tm, nfeat_p), lambda i: (i, 0)),
                pl.BlockSpec((nfeat_p, 2 * nhid_p), lambda i: (0, 0)),
            ],
            out_specs=pl.BlockSpec((tm, 2 * nhid_p), lambda i: (i, 0)),
        ),
        compiler_params=cparams,
    )(x_p, w_cat)

    # ---- Pass 2: tiled aggregation with K-reduction last ----------------------
    out_p = pl.pallas_call(
        _aggr_kernel,
        out_shape=jax.ShapeDtypeStruct((n_p, nhid_p), f32),
        grid_spec=pltpu.PrefetchScalarGridSpec(
            num_scalar_prefetch=0,
            grid=(n_p // tm, n_p // tk),                       # k (reduction) last
            in_specs=[
                pl.BlockSpec((tm, tk), lambda i, k: (i, k)),       # A_norm tile
                pl.BlockSpec((tk, nhid_p), lambda i, k: (k, 1)),   # H_neigh rows k
                pl.BlockSpec((tm, nhid_p), lambda i, k: (i, 0)),   # H_self rows i
                pl.BlockSpec((1, nhid_p), lambda i, k: (0, 0)),    # bias
            ],
            out_specs=pl.BlockSpec((tm, nhid_p), lambda i, k: (i, 0)),
            scratch_shapes=[pltpu.VMEM((tm, nhid_p), f32)],
        ),
        compiler_params=pltpu.CompilerParams(
            dimension_semantics=("parallel", "arbitrary"),
            vmem_limit_bytes=32 * 1024 * 1024,
        ),
    )(adj_p, h, h, b_p)

    return out_p[:n, :nhid]


def reference_forward(adj_norm, x, w_self, w_neigh, bias):
    agg = adj_norm @ x
    return jnp.maximum(x @ w_self + agg @ w_neigh + bias.reshape(1, -1), 0.0)


if __name__ == "__main__":
    key = jax.random.PRNGKey(0)
    n_nodes, nfeat, nhid = 1024, 96, 64   # exercises padding + multi-step K grid

    k_x, k_ws, k_wn, k_b, k_e = jax.random.split(key, 5)

    # Node features.
    x = jax.random.normal(k_x, (n_nodes, nfeat), dtype=jnp.float32)

    # Deterministic random graph -> dense adjacency, row-normalized (mean aggr).
    edge_logits = jax.random.uniform(k_e, (n_nodes, n_nodes))
    adj = (edge_logits < 0.05).astype(jnp.float32)
    adj = adj * (1.0 - jnp.eye(n_nodes))              # no self loops in aggregation
    deg = jnp.maximum(adj.sum(axis=1, keepdims=True), 1.0)
    adj_norm = adj / deg                              # row-normalized: mean over neighbors

    # SAGEConv parameters (fc_self: nfeat->nhid, fc_neigh: nfeat->nhid, bias).
    w_self = jax.random.normal(k_ws, (nfeat, nhid), dtype=jnp.float32) * 0.1
    w_neigh = jax.random.normal(k_wn, (nfeat, nhid), dtype=jnp.float32) * 0.1
    bias = jax.random.normal(k_b, (nhid,), dtype=jnp.float32) * 0.01

    out = sage_body_forward(adj_norm, x, w_self, w_neigh, bias)
    out = jax.block_until_ready(out)

    ref = reference_forward(adj_norm, x, w_self, w_neigh, bias)
    assert out.shape == (n_nodes, nhid)
    # bf16 MXU operands vs f32 reference -> loose tolerance (f32 accumulation).
    assert jnp.allclose(out, ref, atol=3e-2, rtol=3e-2), (
        float(jnp.max(jnp.abs(out - ref))))

    print("KERNEL_OK")
</pallas_src>

<mosaic_0001>
module attributes {stable_mosaic.version = 11 : i64} {
  func.func @_proj_kernel(%arg0: i32, %arg1: memref<256x128xbf16, #tpu.memory_space<vmem>>, %arg2: memref<128x256xbf16, #tpu.memory_space<vmem>>, %arg3: memref<256x256xbf16, #tpu.memory_space<vmem>>) attributes {dimension_semantics = [#tpu.dimension_semantics<parallel>], iteration_bounds = array<i64: 4>, scalar_prefetch = 0 : i64, scratch_operands = 0 : i64, tpu.core_type = #tpu.core_type<tc>, window_params = [{transform_indices = @transform_0, window_bounds = array<i64: 256, 128>}, {pipeline_mode = #tpu.pipeline_mode<synchronous>, transform_indices = @transform_1, window_bounds = array<i64: 128, 256>}, {transform_indices = @transform_2, window_bounds = array<i64: 256, 256>}]} {
    %c0 = arith.constant 0 : index
    %c0_0 = arith.constant 0 : index
    %0 = vector.load %arg1[%c0, %c0_0] : memref<256x128xbf16, #tpu.memory_space<vmem>>, vector<256x128xbf16>
    %c0_1 = arith.constant 0 : index
    %c0_2 = arith.constant 0 : index
    %1 = vector.load %arg2[%c0_1, %c0_2] : memref<128x256xbf16, #tpu.memory_space<vmem>>, vector<128x256xbf16>
    %cst = arith.constant dense<0.000000e+00> : vector<256x256xf32>
    %2 = tpu.matmul %0, %1, %cst {dimension_numbers = #tpu.dot_dimension_numbers<[1], [0], [0], [1], [0, 0, 1, 1], [], []>} : vector<256x128xbf16>, vector<128x256xbf16>, vector<256x256xf32> -> vector<256x256xf32>
    %3 = arith.truncf %2 : vector<256x256xf32> to vector<256x256xbf16>
    %c0_3 = arith.constant 0 : index
    %c0_4 = arith.constant 0 : index
    %4 = vector.load %arg3[%c0_3, %c0_4] : memref<256x256xbf16, #tpu.memory_space<vmem>>, vector<256x256xbf16>
    tpu.vector_store %arg3[%c0_3, %c0_4], %3 {strides = array<i32>} : memref<256x256xbf16, #tpu.memory_space<vmem>>, vector<256x256xbf16>,
    return
  }
  func.func @transform_0(%arg0: i32) -> (i32, i32) {
    %c0_i32 = arith.constant 0 : i32
    %c0_i32_0 = arith.constant 0 : i32
    return %arg0, %c0_i32 : i32, i32
  }
  func.func @transform_1(%arg0: i32) -> (i32, i32) {
    %c0_i32 = arith.constant 0 : i32
    %c0_i32_0 = arith.constant 0 : i32
    %c0_i32_1 = arith.constant 0 : i32
    return %c0_i32, %c0_i32_0 : i32, i32
  }
  func.func @transform_2(%arg0: i32) -> (i32, i32) {
    %c0_i32 = arith.constant 0 : i32
    %c0_i32_0 = arith.constant 0 : i32
    return %arg0, %c0_i32 : i32, i32
  }
}

</mosaic_0001>

<llo_original>
// kernel: tpu_custom_call.1
$region0: #{tpu_custom_call.1}
  #allocation0 [shape = 'u32[]', space=smem, size = 0x4, offset = 0x4, fixed_abs, tag = 'smem constant byte address 0x4 - core index']
  #allocation1 [shape = 'u32[144,128]{1,0:T(1,128)}', space=vmem, size = 0x12000, scoped, tag = 'internal scratch']
  %s0 = inlined_call_operand.hbm [shape: bf16[1024,128], index: 0, kind: input, shape index: {}]
  %s1 = inlined_call_operand.hbm [shape: bf16[128,256], index: 1, kind: input, shape index: {}]
  %s2 = inlined_call_operand.hbm [shape: bf16[1024,256], index: 2, kind: output, shape index: {}]
  %s3 = sld [smem:[#allocation0]]
  $region49: #{tpu_custom_call.1} parent=0
    _
  %s5 = ssub.s32 1, %s3
  %s6 = scalar_select 0, %s5, %s3
  $region1: #{tpu_custom_call.1} parent=0
    #allocation2 [shape = 'u8[131072]{0}', space=vmem, size = 0x20000, scoped, tag = 'input window, operand 0']
    #allocation3 [shape = 's32[2]{0}', space=sflag, size = 0x8, scoped, tag = 'scoped memory for tpu_custom_call.1']
    #allocation4 [shape = 's32[2]{0}', space=sflag, size = 0x8, scoped, tag = 'scoped memory for tpu_custom_call.1']
    #allocation5 [shape = 'u8[65536]{0}', space=vmem, size = 0x10000, scoped, tag = 'input window, operand 1, single buffered']
    #allocation6 [shape = 's32[1]{0}', space=sflag, size = 0x4, scoped, tag = 'scoped memory for tpu_custom_call.1']
    #allocation7 [shape = 'u8[262144]{0}', space=vmem, size = 0x40000, scoped, tag = 'output window, operand 0']
    %7 = vsyncpa [#allocation3], 0
    %s8 = scalar_lea.sflag [#allocation3], 1
    %9 = vsyncpa %s8, 0
    %10 = vsyncpa [#allocation6], 0
    %11 = vsyncpa [#allocation4], 0
    %s12 = scalar_lea.sflag [#allocation4], 1
    %13 = vsyncpa %s12, 0
    loop: start=0, step=1, limit=6
    $region2: #{tpu_custom_call.1} parent=1 // loop_pre_header
      _
    $region3: #{tpu_custom_call.1} parent=1 // loop_header
      %s15 = sphi 0, %s19
      %p16 = scmp.ge.s32.totalorder %s15, 6
      %s25 = sphi 0, %s27
      %s28 = sphi 0, %s25
      %s29 = sphi 0, %s28
      %s45 = sphi 0, %s29
      %s49 = sphi 0, %s49
      %s51 = sphi 0, %s49
      %s52 = sphi 0, %s51
      %s66 = sphi 0, %s52
      %s72 = sphi 0, %s74
      %s75 = sphi 0, %s72
      %s76 = sphi 0, %s75
      %s92 = sphi 0, %s76
    $region4: #{tpu_custom_call.1} parent=1 // loop_header_branch
      %18 = sbr.rel (%p16) target = $region8
    $region5: #{tpu_custom_call.1} parent=1 // loop_body
      %s20 = ssub.s32 %s15, 1
      %s21 = ssub.s32 %s15, 2
      %s22 = sadd.s32 %s15, 1
      %s23 = ssub.s32 %s15, %s22
      %p24 = scmp.eq.s32.totalorder %s23, 0
      %s26 = sadd.s32 %s25, 1
      %s27 = scalar_select %p24, %s25, %s26
      %p30 = pneg %p24
      %p31 = scmp.eq.s32.totalorder %s15, 3
      %p32 = por %p30, %p31
      %p33 = scmp.ne.s32.totalorder %s25, %s28
      %p34 = scmp.eq.s32.totalorder %s15, 0
      %p35 = por %p33, %p34
      %p36 = scmp.ne.s32.totalorder %s25, %s28
      %p37 = scmp.eq.s32.totalorder %s20, 3
      %p38 = por %p36, %p37
      %p39 = scmp.ne.s32.totalorder %s28, %s29
      %p40 = scmp.eq.s32.totalorder %s20, 0
      %p41 = por %p39, %p40
      %p42 = scmp.ne.s32.totalorder %s28, %s29
      %p43 = scmp.eq.s32.totalorder %s21, 3
      %p44 = por %p42, %p43
      %p46 = scmp.ne.s32.totalorder %s29, %s45
      %p47 = scmp.eq.s32.totalorder %s21, 0
      %p48 = por %p46, %p47
      %s50 = sadd.s32 %s49, 1
      %p53 = scmp.eq.s32.totalorder %s15, 3
      %p54 = scmp.ne.s32.totalorder %s49, %s51
      %p55 = scmp.eq.s32.totalorder %s15, 0
      %p56 = por %p54, %p55
      %p57 = scmp.ne.s32.totalorder %s49, %s51
      %p58 = scmp.eq.s32.totalorder %s20, 3
      %p59 = por %p57, %p58
      %p60 = scmp.ne.s32.totalorder %s51, %s52
      %p61 = scmp.eq.s32.totalorder %s20, 0
      %p62 = por %p60, %p61
      %p63 = scmp.ne.s32.totalorder %s51, %s52
      %p64 = scmp.eq.s32.totalorder %s21, 3
      %p65 = por %p63, %p64
      %p67 = scmp.ne.s32.totalorder %s52, %s66
      %p68 = scmp.eq.s32.totalorder %s21, 0
      %p69 = por %p67, %p68
      %s70 = ssub.s32 %s15, %s22
      %p71 = scmp.eq.s32.totalorder %s70, 0
      %s73 = sadd.s32 %s72, 1
      %s74 = scalar_select %p71, %s72, %s73
      %p77 = pneg %p71
      %p78 = scmp.eq.s32.totalorder %s15, 3
      %p79 = por %p77, %p78
      %p80 = scmp.ne.s32.totalorder %s72, %s75
      %p81 = scmp.eq.s32.totalorder %s15, 0
      %p82 = por %p80, %p81
      %p83 = scmp.ne.s32.totalorder %s72, %s75
      %p84 = scmp.eq.s32.totalorder %s20, 3
      %p85 = por %p83, %p84
      %p86 = scmp.ne.s32.totalorder %s75, %s76
      %p87 = scmp.eq.s32.totalorder %s20, 0
      %p88 = por %p86, %p87
      %p89 = scmp.ne.s32.totalorder %s75, %s76
      %p90 = scmp.eq.s32.totalorder %s21, 3
      %p91 = por %p89, %p90
      %p93 = scmp.ne.s32.totalorder %s76, %s92
      %p94 = scmp.eq.s32.totalorder %s21, 0
      %p95 = por %p93, %p94
      %p96 = scmp.le.s32.totalorder 1, %s15
      %p97 = scmp.lt.s32.totalorder %s15, 5
      %p98 = pnand %p96, %p97
      %p99 = pneg %p98
      // Predicated region
      $region9: #{tpu_custom_call.1} parent=5 // pred_check
        _
      $region10: #{tpu_custom_call.1} parent=5 // pred_check_branch
        %101 = sbr.rel (%p98) target = $region12
      $region11: #{tpu_custom_call.1} parent=5 // pred_region
        %s102 = ssub.s32 %s15, 1
        // Predicated region
        $region13: #{tpu_custom_call.1} parent=11 // pred_check
          %p103 = pneg %p62
        $region14: #{tpu_custom_call.1} parent=11 // pred_check_branch
          %105 = sbr.rel (%p103) target = $region16
        $region15: #{tpu_custom_call.1} parent=11 // pred_region
          %s107 = ssub.s32 2048, 2048
          %108 = vsyncadd [#allocation6], %s107
          %s109 = sshll.u32 [#allocation5], 4
          %s110 = int_to_ptr.vmem [resolvable:$true] %s109
          %115 = dma.hbm_to_vmem [thread:$0]  %s1, 2048, %s110, [#allocation6], 128, 128, 8
        $region16: #{tpu_custom_call.1} parent=11 // pred_fallthru
          _
      $region12: #{tpu_custom_call.1} parent=5 // pred_fallthru
        _
      %p116 = scmp.lt.s32.totalorder %s15, 4
      // Predicated region
      $region17: #{tpu_custom_call.1} parent=5 // pred_check
        %p117 = pneg %p116
      $region18: #{tpu_custom_call.1} parent=5 // pred_check_branch
        %119 = sbr.rel (%p117) target = $region20
      $region19: #{tpu_custom_call.1} parent=5 // pred_region
        // Predicated region
        $region21: #{tpu_custom_call.1} parent=19 // pred_check
          %p120 = pneg %p35
        $region22: #{tpu_custom_call.1} parent=19 // pred_check_branch
          %122 = sbr.rel (%p120) target = $region24
        $region23: #{tpu_custom_call.1} parent=19 // pred_region
          %s123 = sand.u32 %s25, 1
          %s124 = scalar_lea.sflag [#allocation3], %s123
          %s125 = sand.u32 %s25, 1
          %s126 = smul.addr %s125, 128
          %s127 = scalar_lea.vmem [#allocation2], %s126
          %s128 = smul.u32 32, %s15
          %s130 = ssub.s32 2048, 2048
          %131 = vsyncadd %s124, %s130
          %s132 = smul.addr %s128, 64
          %s133 = scalar_lea.hbm %s0, %s132
          %s134 = sshll.u32 %s127, 4
          %s135 = int_to_ptr.vmem [resolvable:$true] %s134
          %140 = dma.hbm_to_vmem [thread:$0]  %s133, 2048, %s135, %s124, 64, 64, 4
        $region24: #{tpu_custom_call.1} parent=19 // pred_fallthru
          _
      $region20: #{tpu_custom_call.1} parent=5 // pred_fallthru
        _
      %p141 = scmp.le.s32.totalorder 1, %s15
      %p142 = scmp.lt.s32.totalorder %s15, 5
      %p143 = pnand %p141, %p142
      %p144 = pneg %p143
      // Predicated region
      $region25: #{tpu_custom_call.1} parent=5 // pred_check
        _
      $region26: #{tpu_custom_call.1} parent=5 // pred_check_branch
        %146 = sbr.rel (%p143) target = $region28
      $region27: #{tpu_custom_call.1} parent=5 // pred_region
        %s147 = ssub.s32 %s15, 1
        %s148 = sand.u32 %s28, 1
        %s149 = scalar_lea.sflag [#allocation3], %s148
        %s150 = sand.u32 %s28, 1
        %s151 = smul.addr %s150, 128
        %s152 = scalar_lea.vmem [#allocation2], %s151
        // Predicated region
        $region29: #{tpu_custom_call.1} parent=27 // pred_check
          %p153 = pneg %p41
        $region30: #{tpu_custom_call.1} parent=27 // pred_check_branch
          %155 = sbr.rel (%p153) target = $region32
        $region31: #{tpu_custom_call.1} parent=27 // pred_region
          %156 = dma.done %s149, 2048
        $region32: #{tpu_custom_call.1} parent=27 // pred_fallthru
          _
        // Predicated region
        $region33: #{tpu_custom_call.1} parent=27 // pred_check
          %p157 = pneg %p62
        $region34: #{tpu_custom_call.1} parent=27 // pred_check_branch
          %159 = sbr.rel (%p157) target = $region36
        $region35: #{tpu_custom_call.1} parent=27 // pred_region
          %160 = dma.done [#allocation6], 2048
        $region36: #{tpu_custom_call.1} parent=27 // pred_fallthru
          _
        %s161 = sand.u32 %s28, 1
        %s162 = scalar_lea.sflag [#allocation3], %s161
        %s163 = sand.u32 %s28, 1
        %s164 = smul.addr %s163, 128
        %s165 = scalar_lea.vmem [#allocation2], %s164
        %p166 = pneg %p41
        %p167 = pneg %p38
        %p168 = pneg %p62
        %p169 = pneg %p59
        %p170 = pneg %p88
        %p171 = pneg %p85
        %s172 = sand.u32 %s75, 1
        %s173 = scalar_lea.sflag [#allocation4], %s172
        %s174 = sand.u32 %s75, 1
        %s175 = smul.addr %s174, 256
        %s176 = scalar_lea.vmem [#allocation7], %s175
        %s177 = smul.u32 32, %s20
        %s178 = smul.u32 32, %s20
        %v180 = vld [vmem:[%s152] sm:$0xf]
        %v181 = vld [vmem:[%s152 + $0x4] sm:$0xf]
        %v182 = vld [vmem:[%s152 + $0x8] sm:$0xf]
        %v183 = vld [vmem:[%s152 + $0xc] sm:$0xf]
        %v184 = vld [vmem:[%s152 + $0x10] sm:$0xf]
        %v185 = vld [vmem:[%s152 + $0x14] sm:$0xf]
        %v186 = vld [vmem:[%s152 + $0x18] sm:$0xf]
        %v187 = vld [vmem:[%s152 + $0x1c] sm:$0xf]
        %v188 = vld [vmem:[%s152 + $0x20] sm:$0xf]
        %v189 = vld [vmem:[%s152 + $0x24] sm:$0xf]
        %v190 = vld [vmem:[%s152 + $0x28] sm:$0xf]
        %v191 = vld [vmem:[%s152 + $0x2c] sm:$0xf]
        %v192 = vld [vmem:[%s152 + $0x30] sm:$0xf]
        %v193 = vld [vmem:[%s152 + $0x34] sm:$0xf]
        %v194 = vld [vmem:[%s152 + $0x38] sm:$0xf]
        %v195 = vld [vmem:[%s152 + $0x3c] sm:$0xf]
        %v196 = vld [vmem:[%s152 + $0x40] sm:$0xf]
        %v197 = vld [vmem:[%s152 + $0x44] sm:$0xf]
        %v198 = vld [vmem:[%s152 + $0x48] sm:$0xf]
        %v199 = vld [vmem:[%s152 + $0x4c] sm:$0xf]
        %v200 = vld [vmem:[%s152 + $0x50] sm:$0xf]
        %v201 = vld [vmem:[%s152 + $0x54] sm:$0xf]
        %v202 = vld [vmem:[%s152 + $0x58] sm:$0xf]
        %v203 = vld [vmem:[%s152 + $0x5c] sm:$0xf]
        %v204 = vld [vmem:[%s152 + $0x60] sm:$0xf]
        %v205 = vld [vmem:[%s152 + $0x64] sm:$0xf]
        %v206 = vld [vmem:[%s152 + $0x68] sm:$0xf]
        %v207 = vld [vmem:[%s152 + $0x6c] sm:$0xf]
        %v208 = vld [vmem:[%s152 + $0x70] sm:$0xf]
        %v209 = vld [vmem:[%s152 + $0x74] sm:$0xf]
        %v210 = vld [vmem:[%s152 + $0x78] sm:$0xf]
        %v211 = vld [vmem:[%s152 + $0x7c] sm:$0xf]
        %v212 = vld [vmem:[#allocation5] sm:$0xff]
        %v213 = vld [vmem:[#allocation5 + $0x8] sm:$0xff]
        %v214 = vld [vmem:[#allocation5 + $0x10] sm:$0xff]
        %v215 = vld [vmem:[#allocation5 + $0x18] sm:$0xff]
        %v216 = vld [vmem:[#allocation5 + $0x20] sm:$0xff]
        %v217 = vld [vmem:[#allocation5 + $0x28] sm:$0xff]
        %v218 = vld [vmem:[#allocation5 + $0x30] sm:$0xff]
        %v219 = vld [vmem:[#allocation5 + $0x38] sm:$0xff]
        %v220 = vld [vmem:[#allocation5 + $0x40] sm:$0xff]
        %v221 = vld [vmem:[#allocation5 + $0x48] sm:$0xff]
        %v222 = vld [vmem:[#allocation5 + $0x50] sm:$0xff]
        %v223 = vld [vmem:[#allocation5 + $0x58] sm:$0xff]
        %v224 = vld [vmem:[#allocation5 + $0x60] sm:$0xff]
        %v225 = vld [vmem:[#allocation5 + $0x68] sm:$0xff]
        %v226 = vld [vmem:[#allocation5 + $0x70] sm:$0xff]
        %v227 = vld [vmem:[#allocation5 + $0x78] sm:$0xff]
        %v260 = vunpack.c.l.b16 %v180
        %v261 = vunpack.c.l.b16 %v181
        %v262 = vunpack.c.l.b16 %v182
        %v263 = vunpack.c.l.b16 %v183
        %v264 = vunpack.c.l.b16 %v184
        %v265 = vunpack.c.l.b16 %v185
        %v266 = vunpack.c.l.b16 %v186
        %v267 = vunpack.c.l.b16 %v187
        %v268 = vunpack.c.l.b16 %v188
        %v269 = vunpack.c.l.b16 %v189
        %v270 = vunpack.c.l.b16 %v190
        %v271 = vunpack.c.l.b16 %v191
        %v272 = vunpack.c.l.b16 %v192
        %v273 = vunpack.c.l.b16 %v193
        %v274 = vunpack.c.l.b16 %v194
        %v275 = vunpack.c.l.b16 %v195
        %v276 = vunpack.c.l.b16 %v196
        %v277 = vunpack.c.l.b16 %v197
        %v278 = vunpack.c.l.b16 %v198
        %v279 = vunpack.c.l.b16 %v199
        %v280 = vunpack.c.l.b16 %v200
        %v281 = vunpack.c.l.b16 %v201
        %v282 = vunpack.c.l.b16 %v202
        %v283 = vunpack.c.l.b16 %v203
        %v284 = vunpack.c.l.b16 %v204
        %v285 = vunpack.c.l.b16 %v205
        %v286 = vunpack.c.l.b16 %v206
        %v287 = vunpack.c.l.b16 %v207
        %v288 = vunpack.c.l.b16 %v208
        %v289 = vunpack.c.l.b16 %v209
        %v290 = vunpack.c.l.b16 %v210
        %v291 = vunpack.c.l.b16 %v211
        %v292 = vpack.c.b16 %v261, %v260
        %v293 = vpack.c.b16 %v263, %v262
        %v294 = vpack.c.b16 %v265, %v264
        %v295 = vpack.c.b16 %v267, %v266
        %v296 = vpack.c.b16 %v269, %v268
        %v297 = vpack.c.b16 %v271, %v270
        %v298 = vpack.c.b16 %v273, %v272
        %v299 = vpack.c.b16 %v275, %v274
        %v300 = vpack.c.b16 %v277, %v276
        %v301 = vpack.c.b16 %v279, %v278
        %v302 = vpack.c.b16 %v281, %v280
        %v303 = vpack.c.b16 %v283, %v282
        %v304 = vpack.c.b16 %v285, %v284
        %v305 = vpack.c.b16 %v287, %v286
        %v306 = vpack.c.b16 %v289, %v288
        %v307 = vpack.c.b16 %v291, %v290
        %v340 = vunpack.c.l.b16 %v212
        %v341 = vunpack.c.h.b16 %v212
        %v342 = vunpack.c.l.b16 %v213
        %v343 = vunpack.c.h.b16 %v213
        %v344 = vunpack.c.l.b16 %v214
        %v345 = vunpack.c.h.b16 %v214
        %v346 = vunpack.c.l.b16 %v215
        %v347 = vunpack.c.h.b16 %v215
        %v348 = vunpack.c.l.b16 %v216
        %v349 = vunpack.c.h.b16 %v216
        %v350 = vunpack.c.l.b16 %v217
        %v351 = vunpack.c.h.b16 %v217
        %v352 = vunpack.c.l.b16 %v218
        %v353 = vunpack.c.h.b16 %v218
        %v354 = vunpack.c.l.b16 %v219
        %v355 = vunpack.c.h.b16 %v219
        %v356 = vunpack.c.l.b16 %v220
        %v357 = vunpack.c.h.b16 %v220
        %v358 = vunpack.c.l.b16 %v221
        %v359 = vunpack.c.h.b16 %v221
        %v360 = vunpack.c.l.b16 %v222
        %v361 = vunpack.c.h.b16 %v222
        %v362 = vunpack.c.l.b16 %v223
        %v363 = vunpack.c.h.b16 %v223
        %v364 = vunpack.c.l.b16 %v224
        %v365 = vunpack.c.h.b16 %v224
        %v366 = vunpack.c.l.b16 %v225
        %v367 = vunpack.c.h.b16 %v225
        %v368 = vunpack.c.l.b16 %v226
        %v369 = vunpack.c.h.b16 %v226
        %v370 = vunpack.c.l.b16 %v227
        %v371 = vunpack.c.h.b16 %v227
        %v372 = vpack.c.b16 %v342, %v340
        %v373 = vpack.c.b16 %v343, %v341
        %v374 = vpack.c.b16 %v346, %v344
        %v375 = vpack.c.b16 %v347, %v345
        %v376 = vpack.c.b16 %v350, %v348
        %v377 = vpack.c.b16 %v351, %v349
        %v378 = vpack.c.b16 %v354, %v352
        %v379 = vpack.c.b16 %v355, %v353
        %v380 = vpack.c.b16 %v358, %v356
        %v381 = vpack.c.b16 %v359, %v357
        %v382 = vpack.c.b16 %v362, %v360
        %v383 = vpack.c.b16 %v363, %v361
        %v384 = vpack.c.b16 %v366, %v364
        %v385 = vpack.c.b16 %v367, %v365
        %v386 = vpack.c.b16 %v370, %v368
        %v387 = vpack.c.b16 %v371, %v369
        %404 = vmatprep.subr.bf16.mxu0 %v373
        %405 = vmatpush1.bf16.msra.mxu0 %v372
        %406 = vmatprep.subr.bf16.mxu0 %v375
        %407 = vmatpush1.bf16.msra.mxu0 %v374
        %408 = vmatprep.subr.bf16.mxu0 %v377
        %409 = vmatpush1.bf16.msra.mxu0 %v376
        %410 = vmatprep.subr.bf16.mxu0 %v379
        %411 = vmatpush1.bf16.msra.mxu0 %v378
        %412 = vmatprep.subr.bf16.mxu0 %v381
        %413 = vmatpush1.bf16.msra.mxu0 %v380
        %414 = vmatprep.subr.bf16.mxu0 %v383
        %415 = vmatpush1.bf16.msra.mxu0 %v382
        %416 = vmatprep.subr.bf16.mxu0 %v385
        %417 = vmatpush1.bf16.msra.mxu0 %v384
        %418 = vmatprep.subr.bf16.mxu0 %v387
        %419 = vmatpush1.bf16.msra.mxu0 %v386
        %420 = vmatprep.subr.bf16.mxu0 0
        %421 = vmatpush1.bf16.msra.mxu0 0
        %422 = vmatprep.subr.bf16.mxu0 0
        %423 = vmatpush1.bf16.msra.mxu0 0
        %424 = vmatprep.subr.bf16.mxu0 0
        %425 = vmatpush1.bf16.msra.mxu0 0
        %426 = vmatprep.subr.bf16.mxu0 0
        %427 = vmatpush1.bf16.msra.mxu0 0
        %428 = vmatprep.subr.bf16.mxu0 0
        %429 = vmatpush1.bf16.msra.mxu0 0
        %430 = vmatprep.subr.bf16.mxu0 0
        %431 = vmatpush1.bf16.msra.mxu0 0
        %432 = vmatprep.subr.bf16.mxu0 0
        %433 = vmatpush1.bf16.msra.mxu0 0
        %434 = vmatprep.subr.bf16.mxu0 0
        %435 = vmatpush1.bf16.msra.mxu0 0
        %436 = vmatprep.mubr.bf16.mxu0 0
        %437 = vmatmul.mubr.bf16.gmra.mrb[0].mxu0 %v292
        %v438 = vpop.f32.mrb[0].mxu0
        %v439 = vadd.f32 0.0, %v438
        %v440 = vpop.f32.mrb[0].mxu0
        %v441 = vadd.f32 0.0, %v440
        %v442 = vpop.f32.mrb[0].mxu0
        %v443 = vadd.f32 0.0, %v442
        %v444 = vpop.f32.mrb[0].mxu0
        %v445 = vadd.f32 0.0, %v444
        %446 = vmatprep.mubr.bf16.mxu0 0
        %447 = vmatmul.mubr.bf16.gmra.mrb[0].mxu0 %v293
        %v448 = vpop.f32.mrb[0].mxu0
        %v449 = vadd.f32 0.0, %v448
        %v450 = vpop.f32.mrb[0].mxu0
        %v451 = vadd.f32 0.0, %v450
        %v452 = vpop.f32.mrb[0].mxu0
        %v453 = vadd.f32 0.0, %v452
        %v454 = vpop.f32.mrb[0].mxu0
        %v455 = vadd.f32 0.0, %v454
        %456 = vmatprep.mubr.bf16.mxu0 0
        %457 = vmatmul.mubr.bf16.gmra.mrb[0].mxu0 %v294
        %v458 = vpop.f32.mrb[0].mxu0
        %v459 = vadd.f32 0.0, %v458
        %v460 = vpop.f32.mrb[0].mxu0
        %v461 = vadd.f32 0.0, %v460
        %v462 = vpop.f32.mrb[0].mxu0
        %v463 = vadd.f32 0.0, %v462
        %v464 = vpop.f32.mrb[0].mxu0
        %v465 = vadd.f32 0.0, %v464
        %466 = vmatprep.mubr.bf16.mxu0 0
        %467 = vmatmul.mubr.bf16.gmra.mrb[0].mxu0 %v295
        %v468 = vpop.f32.mrb[0].mxu0
        %v469 = vadd.f32 0.0, %v468
        %v470 = vpop.f32.mrb[0].mxu0
        %v471 = vadd.f32 0.0, %v470
        %v472 = vpop.f32.mrb[0].mxu0
        %v473 = vadd.f32 0.0, %v472
        %v474 = vpop.f32.mrb[0].mxu0
        %v475 = vadd.f32 0.0, %v474
        %476 = vmatprep.mubr.bf16.mxu0 0
        %477 = vmatmul.mubr.bf16.gmra.mrb[0].mxu0 %v296
        %v478 = vpop.f32.mrb[0].mxu0
        %v479 = vadd.f32 0.0, %v478
        %v480 = vpop.f32.mrb[0].mxu0
        %v481 = vadd.f32 0.0, %v480
        %v482 = vpop.f32.mrb[0].mxu0
        %v483 = vadd.f32 0.0, %v482
        %v484 = vpop.f32.mrb[0].mxu0
        %v485 = vadd.f32 0.0, %v484
        %486 = vmatprep.mubr.bf16.mxu0 0
        %487 = vmatmul.mubr.bf16.gmra.mrb[0].mxu0 %v297
        %v488 = vpop.f32.mrb[0].mxu0
        %v489 = vadd.f32 0.0, %v488
        %v490 = vpop.f32.mrb[0].mxu0
        %v491 = vadd.f32 0.0, %v490
        %v492 = vpop.f32.mrb[0].mxu0
        %v493 = vadd.f32 0.0, %v492
        %v494 = vpop.f32.mrb[0].mxu0
        %v495 = vadd.f32 0.0, %v494
        %496 = vmatprep.mubr.bf16.mxu0 0
        %497 = vmatmul.mubr.bf16.gmra.mrb[0].mxu0 %v298
        %v498 = vpop.f32.mrb[0].mxu0
        %v499 = vadd.f32 0.0, %v498
        %v500 = vpop.f32.mrb[0].mxu0
        %v501 = vadd.f32 0.0, %v500
        %v502 = vpop.f32.mrb[0].mxu0
        %v503 = vadd.f32 0.0, %v502
        %v504 = vpop.f32.mrb[0].mxu0
        %v505 = vadd.f32 0.0, %v504
        %506 = vmatprep.mubr.bf16.mxu0 0
        %507 = vmatmul.mubr.bf16.gmra.mrb[0].mxu0 %v299
        %v508 = vpop.f32.mrb[0].mxu0
        %v509 = vadd.f32 0.0, %v508
        %v510 = vpop.f32.mrb[0].mxu0
        %v511 = vadd.f32 0.0, %v510
        %v512 = vpop.f32.mrb[0].mxu0
        %v513 = vadd.f32 0.0, %v512
        %v514 = vpop.f32.mrb[0].mxu0
        %v515 = vadd.f32 0.0, %v514
        %516 = vmatprep.mubr.bf16.mxu0 0
        %517 = vmatmul.mubr.bf16.gmra.mrb[0].mxu0 %v300
        %v518 = vpop.f32.mrb[0].mxu0
        %v519 = vadd.f32 0.0, %v518
        %v520 = vpop.f32.mrb[0].mxu0
        %v521 = vadd.f32 0.0, %v520
        %v522 = vpop.f32.mrb[0].mxu0
        %v523 = vadd.f32 0.0, %v522
        %v524 = vpop.f32.mrb[0].mxu0
        %v525 = vadd.f32 0.0, %v524
        %526 = vmatprep.mubr.bf16.mxu0 0
        %527 = vmatmul.mubr.bf16.gmra.mrb[0].mxu0 %v301
        %v528 = vpop.f32.mrb[0].mxu0
        %v529 = vadd.f32 0.0, %v528
        %v530 = vpop.f32.mrb[0].mxu0
        %v531 = vadd.f32 0.0, %v530
        %v532 = vpop.f32.mrb[0].mxu0
        %v533 = vadd.f32 0.0, %v532
        %v534 = vpop.f32.mrb[0].mxu0
        %v535 = vadd.f32 0.0, %v534
        %536 = vmatprep.mubr.bf16.mxu0 0
        %537 = vmatmul.mubr.bf16.gmra.mrb[0].mxu0 %v302
        %v538 = vpop.f32.mrb[0].mxu0
        %v539 = vadd.f32 0.0, %v538
        %v540 = vpop.f32.mrb[0].mxu0
        %v541 = vadd.f32 0.0, %v540
        %v542 = vpop.f32.mrb[0].mxu0
        %v543 = vadd.f32 0.0, %v542
        %v544 = vpop.f32.mrb[0].mxu0
        %v545 = vadd.f32 0.0, %v544
        %546 = vmatprep.mubr.bf16.mxu0 0
        %547 = vmatmul.mubr.bf16.gmra.mrb[0].mxu0 %v303
        %v548 = vpop.f32.mrb[0].mxu0
        %v549 = vadd.f32 0.0, %v548
        %v550 = vpop.f32.mrb[0].mxu0
        %v551 = vadd.f32 0.0, %v550
        %v552 = vpop.f32.mrb[0].mxu0
        %v553 = vadd.f32 0.0, %v552
        %v554 = vpop.f32.mrb[0].mxu0
        %v555 = vadd.f32 0.0, %v554
        %556 = vmatprep.mubr.bf16.mxu0 0
        %557 = vmatmul.mubr.bf16.gmra.mrb[0].mxu0 %v304
        %v558 = vpop.f32.mrb[0].mxu0
        %v559 = vadd.f32 0.0, %v558
        %v560 = vpop.f32.mrb[0].mxu0
        %v561 = vadd.f32 0.0, %v560
        %v562 = vpop.f32.mrb[0].mxu0
        %v563 = vadd.f32 0.0, %v562
        %v564 = vpop.f32.mrb[0].mxu0
        %v565 = vadd.f32 0.0, %v564
        %566 = vmatprep.mubr.bf16.mxu0 0
        %567 = vmatmul.mubr.bf16.gmra.mrb[0].mxu0 %v305
        %v568 = vpop.f32.mrb[0].mxu0
        %v569 = vadd.f32 0.0, %v568
        %v570 = vpop.f32.mrb[0].mxu0
        %v571 = vadd.f32 0.0, %v570
        %v572 = vpop.f32.mrb[0].mxu0
        %v573 = vadd.f32 0.0, %v572
        %v574 = vpop.f32.mrb[0].mxu0
        %v575 = vadd.f32 0.0, %v574
        %576 = vmatprep.mubr.bf16.mxu0 0
        %577 = vmatmul.mubr.bf16.gmra.mrb[0].mxu0 %v306
        %v578 = vpop.f32.mrb[0].mxu0
        %v579 = vadd.f32 0.0, %v578
        %v580 = vpop.f32.mrb[0].mxu0
        %v581 = vadd.f32 0.0, %v580
        %v582 = vpop.f32.mrb[0].mxu0
        %v583 = vadd.f32 0.0, %v582
        %v584 = vpop.f32.mrb[0].mxu0
        %v585 = vadd.f32 0.0, %v584
        %586 = vmatprep.mubr.bf16.mxu0 0
        %587 = vmatmul.mubr.bf16.gmra.mrb[0].mxu0 %v307
        %v588 = vpop.f32.mrb[0].mxu0
        %v589 = vadd.f32 0.0, %v588
        %v590 = vpop.f32.mrb[0].mxu0
        %v591 = vadd.f32 0.0, %v590
        %v592 = vpop.f32.mrb[0].mxu0
        %v593 = vadd.f32 0.0, %v592
        %v594 = vpop.f32.mrb[0].mxu0
        %v595 = vadd.f32 0.0, %v594
        %596 = vdwg.mxu0
        %v597 = vpack.c.bf16 %v443, %v439
        %v598 = vpack.c.bf16 %v445, %v441
        %v599 = vpack.c.bf16 %v453, %v449
        %v600 = vpack.c.bf16 %v455, %v451
        %v601 = vpack.c.bf16 %v463, %v459
        %v602 = vpack.c.bf16 %v465, %v461
        %v603 = vpack.c.bf16 %v473, %v469
        %v604 = vpack.c.bf16 %v475, %v471
        %v605 = vpack.c.bf16 %v483, %v479
        %v606 = vpack.c.bf16 %v485, %v481
        %v607 = vpack.c.bf16 %v493, %v489
        %v608 = vpack.c.bf16 %v495, %v491
        %v609 = vpack.c.bf16 %v503, %v499
        %v610 = vpack.c.bf16 %v505, %v501
        %v611 = vpack.c.bf16 %v513, %v509
        %v612 = vpack.c.bf16 %v515, %v511
        %v613 = vpack.c.bf16 %v523, %v519
        %v614 = vpack.c.bf16 %v525, %v521
        %v615 = vpack.c.bf16 %v533, %v529
        %v616 = vpack.c.bf16 %v535, %v531
        %v617 = vpack.c.bf16 %v543, %v539
        %v618 = vpack.c.bf16 %v545, %v541
        %v619 = vpack.c.bf16 %v553, %v549
        %v620 = vpack.c.bf16 %v555, %v551
        %v621 = vpack.c.bf16 %v563, %v559
        %v622 = vpack.c.bf16 %v565, %v561
        %v623 = vpack.c.bf16 %v573, %v569
        %v624 = vpack.c.bf16 %v575, %v571
        %v625 = vpack.c.bf16 %v583, %v579
        %v626 = vpack.c.bf16 %v585, %v581
        %v627 = vpack.c.bf16 %v593, %v589
        %v628 = vpack.c.bf16 %v595, %v591
        %v661 = vunpack.c.l.b16 %v597
        %v662 = vunpack.c.l.b16 %v598
        %v663 = vunpack.c.h.b16 %v597
        %v664 = vunpack.c.h.b16 %v598
        %v665 = vunpack.c.l.b16 %v599
        %v666 = vunpack.c.l.b16 %v600
        %v667 = vunpack.c.h.b16 %v599
        %v668 = vunpack.c.h.b16 %v600
        %v669 = vunpack.c.l.b16 %v601
        %v670 = vunpack.c.l.b16 %v602
        %v671 = vunpack.c.h.b16 %v601
        %v672 = vunpack.c.h.b16 %v602
        %v673 = vunpack.c.l.b16 %v603
        %v674 = vunpack.c.l.b16 %v604
        %v675 = vunpack.c.h.b16 %v603
        %v676 = vunpack.c.h.b16 %v604
        %v677 = vunpack.c.l.b16 %v605
        %v678 = vunpack.c.l.b16 %v606
        %v679 = vunpack.c.h.b16 %v605
        %v680 = vunpack.c.h.b16 %v606
        %v681 = vunpack.c.l.b16 %v607
        %v682 = vunpack.c.l.b16 %v608
        %v683 = vunpack.c.h.b16 %v607
        %v684 = vunpack.c.h.b16 %v608
        %v685 = vunpack.c.l.b16 %v609
        %v686 = vunpack.c.l.b16 %v610
        %v687 = vunpack.c.h.b16 %v609
        %v688 = vunpack.c.h.b16 %v610
        %v689 = vunpack.c.l.b16 %v611
        %v690 = vunpack.c.l.b16 %v612
        %v691 = vunpack.c.h.b16 %v611
        %v692 = vunpack.c.h.b16 %v612
        %v693 = vunpack.c.l.b16 %v613
        %v694 = vunpack.c.l.b16 %v614
        %v695 = vunpack.c.h.b16 %v613
        %v696 = vunpack.c.h.b16 %v614
        %v697 = vunpack.c.l.b16 %v615
        %v698 = vunpack.c.l.b16 %v616
        %v699 = vunpack.c.h.b16 %v615
        %v700 = vunpack.c.h.b16 %v616
        %v701 = vunpack.c.l.b16 %v617
        %v702 = vunpack.c.l.b16 %v618
        %v703 = vunpack.c.h.b16 %v617
        %v704 = vunpack.c.h.b16 %v618
        %v705 = vunpack.c.l.b16 %v619
        %v706 = vunpack.c.l.b16 %v620
        %v707 = vunpack.c.h.b16 %v619
        %v708 = vunpack.c.h.b16 %v620
        %v709 = vunpack.c.l.b16 %v621
        %v710 = vunpack.c.l.b16 %v622
        %v711 = vunpack.c.h.b16 %v621
        %v712 = vunpack.c.h.b16 %v622
        %v713 = vunpack.c.l.b16 %v623
        %v714 = vunpack.c.l.b16 %v624
        %v715 = vunpack.c.h.b16 %v623
        %v716 = vunpack.c.h.b16 %v624
        %v717 = vunpack.c.l.b16 %v625
        %v718 = vunpack.c.l.b16 %v626
        %v719 = vunpack.c.h.b16 %v625
        %v720 = vunpack.c.h.b16 %v626
        %v721 = vunpack.c.l.b16 %v627
        %v722 = vunpack.c.l.b16 %v628
        %v723 = vunpack.c.h.b16 %v627
        %v724 = vunpack.c.h.b16 %v628
        %v725 = vpack.c.b16 %v662, %v661
        %v726 = vpack.c.b16 %v664, %v663
        %v727 = vpack.c.b16 %v666, %v665
        %v728 = vpack.c.b16 %v668, %v667
        %v729 = vpack.c.b16 %v670, %v669
        %v730 = vpack.c.b16 %v672, %v671
        %v731 = vpack.c.b16 %v674, %v673
        %v732 = vpack.c.b16 %v676, %v675
        %v733 = vpack.c.b16 %v678, %v677
        %v734 = vpack.c.b16 %v680, %v679
        %v735 = vpack.c.b16 %v682, %v681
        %v736 = vpack.c.b16 %v684, %v683
        %v737 = vpack.c.b16 %v686, %v685
        %v738 = vpack.c.b16 %v688, %v687
        %v739 = vpack.c.b16 %v690, %v689
        %v740 = vpack.c.b16 %v692, %v691
        %v741 = vpack.c.b16 %v694, %v693
        %v742 = vpack.c.b16 %v696, %v695
        %v743 = vpack.c.b16 %v698, %v697
        %v744 = vpack.c.b16 %v700, %v699
        %v745 = vpack.c.b16 %v702, %v701
        %v746 = vpack.c.b16 %v704, %v703
        %v747 = vpack.c.b16 %v706, %v705
        %v748 = vpack.c.b16 %v708, %v707
        %v749 = vpack.c.b16 %v710, %v709
        %v750 = vpack.c.b16 %v712, %v711
        %v751 = vpack.c.b16 %v714, %v713
        %v752 = vpack.c.b16 %v716, %v715
        %v753 = vpack.c.b16 %v718, %v717
        %v754 = vpack.c.b16 %v720, %v719
        %v755 = vpack.c.b16 %v722, %v721
        %v756 = vpack.c.b16 %v724, %v723
        %789 = vst [vmem:[%s176] sm:$0xff] %v725
        %790 = vst [vmem:[%s176 + $0x8] sm:$0xff] %v726
        %791 = vst [vmem:[%s176 + $0x10] sm:$0xff] %v727
        %792 = vst [vmem:[%s176 + $0x18] sm:$0xff] %v728
        %793 = vst [vmem:[%s176 + $0x20] sm:$0xff] %v729
        %794 = vst [vmem:[%s176 + $0x28] sm:$0xff] %v730
        %795 = vst [vmem:[%s176 + $0x30] sm:$0xff] %v731
        %796 = vst [vmem:[%s176 + $0x38] sm:$0xff] %v732
        %797 = vst [vmem:[%s176 + $0x40] sm:$0xff] %v733
        %798 = vst [vmem:[%s176 + $0x48] sm:$0xff] %v734
        %799 = vst [vmem:[%s176 + $0x50] sm:$0xff] %v735
        %800 = vst [vmem:[%s176 + $0x58] sm:$0xff] %v736
        %801 = vst [vmem:[%s176 + $0x60] sm:$0xff] %v737
        %802 = vst [vmem:[%s176 + $0x68] sm:$0xff] %v738
        %803 = vst [vmem:[%s176 + $0x70] sm:$0xff] %v739
        %804 = vst [vmem:[%s176 + $0x78] sm:$0xff] %v740
        %805 = vst [vmem:[%s176 + $0x80] sm:$0xff] %v741
        %806 = vst [vmem:[%s176 + $0x88] sm:$0xff] %v742
        %807 = vst [vmem:[%s176 + $0x90] sm:$0xff] %v743
        %808 = vst [vmem:[%s176 + $0x98] sm:$0xff] %v744
        %809 = vst [vmem:[%s176 + $0xa0] sm:$0xff] %v745
        %810 = vst [vmem:[%s176 + $0xa8] sm:$0xff] %v746
        %811 = vst [vmem:[%s176 + $0xb0] sm:$0xff] %v747
        %812 = vst [vmem:[%s176 + $0xb8] sm:$0xff] %v748
        %813 = vst [vmem:[%s176 + $0xc0] sm:$0xff] %v749
        %814 = vst [vmem:[%s176 + $0xc8] sm:$0xff] %v750
        %815 = vst [vmem:[%s176 + $0xd0] sm:$0xff] %v751
        %816 = vst [vmem:[%s176 + $0xd8] sm:$0xff] %v752
        %817 = vst [vmem:[%s176 + $0xe0] sm:$0xff] %v753
        %818 = vst [vmem:[%s176 + $0xe8] sm:$0xff] %v754
        %819 = vst [vmem:[%s176 + $0xf0] sm:$0xff] %v755
        %820 = vst [vmem:[%s176 + $0xf8] sm:$0xff] %v756
        %s821 = sand.u32 %s75, 1
        %s822 = scalar_lea.sflag [#allocation4], %s821
        %s823 = sand.u32 %s75, 1
        %s824 = smul.addr %s823, 256
        %s825 = scalar_lea.vmem [#allocation7], %s824
        // Predicated region
        $region37: #{tpu_custom_call.1} parent=27 // pred_check
          %p826 = pneg %p85
        $region38: #{tpu_custom_call.1} parent=27 // pred_check_branch
          %828 = sbr.rel (%p826) target = $region40
        $region39: #{tpu_custom_call.1} parent=27 // pred_region
          %s829 = smul.u32 32, %s20
          %s831 = ssub.s32 4096, 4096
          %832 = vsyncadd %s822, %s831
          %s833 = smul.addr %s829, 2
          %s834 = smul.addr %s833, 64
          %s835 = scalar_lea.hbm %s2, %s834
          %s836 = sshll.u32 %s825, 4
          %s837 = int_to_ptr.vmem [resolvable:$true] %s836
          %842 = dma.vmem_to_hbm [thread:$0]  %s837, 4096, %s835, %s822, 128, 128, 8
        $region40: #{tpu_custom_call.1} parent=27 // pred_fallthru
          _
      $region28: #{tpu_custom_call.1} parent=5 // pred_fallthru
        _
      %p843 = scmp.le.s32.totalorder 2, %s15
      // Predicated region
      $region41: #{tpu_custom_call.1} parent=5 // pred_check
        %p844 = pneg %p843
      $region42: #{tpu_custom_call.1} parent=5 // pred_check_branch
        %846 = sbr.rel (%p844) target = $region44
      $region43: #{tpu_custom_call.1} parent=5 // pred_region
        %s847 = ssub.s32 %s15, 2
        // Predicated region
        $region45: #{tpu_custom_call.1} parent=43 // pred_check
          %p848 = pneg %p91
        $region46: #{tpu_custom_call.1} parent=43 // pred_check_branch
          %850 = sbr.rel (%p848) target = $region48
        $region47: #{tpu_custom_call.1} parent=43 // pred_region
          %s851 = sand.u32 %s76, 1
          %s852 = scalar_lea.sflag [#allocation4], %s851
          %s853 = sand.u32 %s76, 1
          %s854 = smul.addr %s853, 256
          %s855 = scalar_lea.vmem [#allocation7], %s854
          %856 = dma.done %s852, 4096
        $region48: #{tpu_custom_call.1} parent=43 // pred_fallthru
          _
      $region44: #{tpu_custom_call.1} parent=5 // pred_fallthru
        _
    $region6: #{tpu_custom_call.1} parent=1 // loop_footer
      %s19 = sadd.s32 1, %s15
    $region7: #{tpu_custom_call.1} parent=1 // loop_footer_branch
      %14 = sbr.rel target = $region3
    $region8: #{tpu_custom_call.1} parent=1 // loop_exit
      _
    %857 = vsyncpa [#allocation3], 1
    %s858 = scalar_lea.sflag [#allocation3], 1
    %859 = vsyncpa %s858, 1
    %860 = vsyncpa [#allocation6], 1
    %861 = vsyncpa [#allocation4], 1
    %s862 = scalar_lea.sflag [#allocation4], 1
    %863 = vsyncpa %s862, 1

</llo_original>
